<compile_context>
chip_gen: v7x
topology: tpu7x:2x2x1
jax: 0.10.0
libtpu: 0.0.40
codegen_flags: <defaults>
</compile_context>

<pallas_src>
import math

import jax
import jax.numpy as jnp
from jax import lax
from jax.experimental import pallas as pl
from jax.experimental.pallas import tpu as pltpu


def lm_head_kernel(x_ref, wt_ref, bt_ref, g_ref, beta_ref, wd_ref, bd_ref,
                   out_ref, t_ref):
    # --- BertPredictionHeadTransform: dense + gelu + LayerNorm ---------------
    # Computed once per row tile (only at vocab-tile index 0), stored in a bf16
    # VMEM scratch and reused for all vocab tiles of this row tile.
    @pl.when(pl.program_id(1) == 0)
    def _():
        x = x_ref[...].astype(jnp.bfloat16)            # bf16 MXU operands
        h = jnp.dot(x, wt_ref[...],
                    preferred_element_type=jnp.float32) + bt_ref[...]
        # exact (erf-based) gelu, f32
        h = h * 0.5 * (1.0 + lax.erf(h * (1.0 / math.sqrt(2.0))))
        # BertLayerNorm: biased variance over last dim, eps=1e-12, f32
        u = jnp.mean(h, axis=-1, keepdims=True)
        s = jnp.mean((h - u) ** 2, axis=-1, keepdims=True)
        h = (h - u) * lax.rsqrt(s + 1e-12)
        t_ref[...] = (h * g_ref[...] + beta_ref[...]).astype(jnp.bfloat16)

    # --- decoder: logits tile = transform @ Wd_tile + bias_tile -------------
    # Wd is pre-transposed to [H, V] on the host -> plain MXU matmul, no
    # in-kernel transpose, no per-step cast of the scratch.
    logits = jnp.dot(t_ref[...], wd_ref[...],
                     preferred_element_type=jnp.float32)
    out_ref[...] = (logits + bd_ref[...]).astype(out_ref.dtype)


def _round_up(x, m):
    return ((x + m - 1) // m) * m


def bert_lm_prediction_head(hidden, params, *, block_rows=None, block_vocab=None,
                            vmem_limit_bytes=None, out_dtype=jnp.float32):
    """hidden: [B, S, H] f32.  params (layouts):
         transform_w [H, H] (pre-transposed: forward uses x @ transform_w),
         transform_b [1, H], ln_gamma [1, H], ln_beta [1, H],
         decoder_w [V, H] (embedding-table layout == torch decoder.weight),
         decoder_b [1, V].
       Returns logits [B, S, V] (out_dtype, f32 by default)."""
    B, S, H = hidden.shape
    V = params["decoder_w"].shape[0]
    M = B * S

    # Row tile: as large as practical — decoder weight is re-streamed from HBM
    # once per row tile, so HBM weight traffic = (M/tm) * V * H * 2B.
    if block_rows is not None:
        tm = block_rows
    elif M <= 1024:
        tm = _round_up(M, 8)
    else:
        tm = 1024
    # Vocab tile: lane-dense multiple of 128; 2048 keeps the double-buffered
    # working set ~35-40 MiB at BERT sizes (fits v7x 64 MiB and v5e/v6e 128 MiB).
    if block_vocab is not None:
        tv = block_vocab
    else:
        tv = min(2048, _round_up(V, 128))

    Mp = _round_up(M, tm)   # pad rows / vocab so every tile is full
    Vp = _round_up(V, tv)

    x = hidden.reshape(M, H).astype(jnp.float32)
    if Mp != M:
        x = jnp.pad(x, ((0, Mp - M), (0, 0)))

    wt = params["transform_w"].astype(jnp.bfloat16)                  # [H, H]
    bt = params["transform_b"].reshape(1, H).astype(jnp.float32)
    g = params["ln_gamma"].reshape(1, H).astype(jnp.float32)
    beta = params["ln_beta"].reshape(1, H).astype(jnp.float32)
    wd = params["decoder_w"].astype(jnp.bfloat16).T                  # [H, V] one-time host transpose
    bd = params["decoder_b"].reshape(1, V).astype(jnp.float32)
    if Vp != V:
        wd = jnp.pad(wd, ((0, 0), (0, Vp - V)))
        bd = jnp.pad(bd, ((0, 0), (0, Vp - V)))

    if vmem_limit_bytes is None:
        try:
            phys = pltpu.get_tpu_info().vmem_capacity_bytes
        except Exception:
            phys = 64 * 1024 * 1024          # conservative fallback (v7x per-TC)
        vmem_limit_bytes = min(100 * 1024 * 1024, int(phys * 0.85))

    def const(shape):
        # These operands never change block index. (Optional extra headroom on
        # v7x: pipeline_mode=pl.Buffered(1) to drop their second buffer.)
        n = len(shape)
        return pl.BlockSpec(shape, lambda i, j, n=n: (0,) * n)

    in_specs = [
        pl.BlockSpec((tm, H), lambda i, j: (i, 0)),   # hidden rows (fixed over vocab axis)
        const((H, H)),                                # transform dense weight (bf16)
        const((1, H)),                                # transform dense bias
        const((1, H)),                                # LayerNorm gamma
        const((1, H)),                                # LayerNorm beta
        pl.BlockSpec((H, tv), lambda i, j: (0, j)),   # decoder weight tile [H, tv] (bf16)
        pl.BlockSpec((1, tv), lambda i, j: (0, j)),   # decoder bias tile
    ]
    out_specs = pl.BlockSpec((tm, tv), lambda i, j: (i, j))

    out = pl.pallas_call(
        lm_head_kernel,
        out_shape=jax.ShapeDtypeStruct((Mp, Vp), out_dtype),
        grid_spec=pltpu.PrefetchScalarGridSpec(
            num_scalar_prefetch=0,
            # Vocab axis MUST stay innermost + "arbitrary" (sequential) so the
            # per-row-tile transform scratch written at j==0 is valid.
            grid=(Mp // tm, Vp // tv),
            in_specs=in_specs,
            out_specs=out_specs,
            scratch_shapes=[pltpu.VMEM((tm, H), jnp.bfloat16)],
        ),
        compiler_params=pltpu.CompilerParams(
            dimension_semantics=("parallel", "arbitrary"),
            vmem_limit_bytes=vmem_limit_bytes,
        ),
    )(x, wt, bt, g, beta, wd, bd)
    return out[:M, :V].reshape(B, S, V)


def _reference(hidden, p):
    """Pure-JAX f32 reference matching the torch module."""
    h = hidden.astype(jnp.float32)
    h = h @ p["transform_w"] + p["transform_b"]
    h = h * 0.5 * (1.0 + lax.erf(h / math.sqrt(2.0)))
    u = jnp.mean(h, axis=-1, keepdims=True)
    s = jnp.mean((h - u) ** 2, axis=-1, keepdims=True)
    h = (h - u) * lax.rsqrt(s + 1e-12)
    h = h * p["ln_gamma"] + p["ln_beta"]
    return h @ p["decoder_w"].T + p["decoder_b"]


if __name__ == "__main__":
    # Small config: batch=2, seq=8, hidden=32, vocab=1000 (deliberately NOT a
    # multiple of 128 to exercise the vocab-padding path: 1000 -> 1024).
    B, S, H, V = 2, 8, 32, 1000

    key = jax.random.PRNGKey(0)
    kx, kw1, kb1, kg, kbt, kw2, kb2 = jax.random.split(key, 7)

    hidden_states = jax.random.normal(kx, (B, S, H), jnp.float32)
    params = dict(
        transform_w=0.02 * jax.random.normal(kw1, (H, H), jnp.float32),   # pre-transposed
        transform_b=0.02 * jax.random.normal(kb1, (1, H), jnp.float32),
        ln_gamma=1.0 + 0.1 * jax.random.normal(kg, (1, H), jnp.float32),
        ln_beta=0.1 * jax.random.normal(kbt, (1, H), jnp.float32),
        decoder_w=0.02 * jax.random.normal(kw2, (V, H), jnp.float32),     # embedding table [V, H]
        decoder_b=0.02 * jax.random.normal(kb2, (1, V), jnp.float32),
    )

    # grid = (2 row tiles, 4 vocab tiles): exercises both axes, scratch reuse
    # across the vocab axis, and the vocab-padding path.
    out = bert_lm_prediction_head(hidden_states, params,
                                  block_rows=8, block_vocab=256)
    out = jax.block_until_ready(out)

    ref = _reference(hidden_states, params)
    assert out.shape == (B, S, V)
    err = float(jnp.max(jnp.abs(out - ref)))
    assert jnp.allclose(out, ref, rtol=2e-2, atol=2e-2), f"max abs err {err}"
    print("KERNEL_OK")
</pallas_src>

<mosaic_0001>
module attributes {stable_mosaic.version = 11 : i64} {
  func.func @lm_head_kernel(%arg0: i32, %arg1: i32, %arg2: memref<8x32xf32, #tpu.memory_space<vmem>>, %arg3: memref<32x32xbf16, #tpu.memory_space<vmem>>, %arg4: memref<1x32xf32, #tpu.memory_space<vmem>>, %arg5: memref<1x32xf32, #tpu.memory_space<vmem>>, %arg6: memref<1x32xf32, #tpu.memory_space<vmem>>, %arg7: memref<32x256xbf16, #tpu.memory_space<vmem>>, %arg8: memref<1x256xf32, #tpu.memory_space<vmem>>, %arg9: memref<8x256xf32, #tpu.memory_space<vmem>>, %arg10: memref<8x32xbf16, #tpu.memory_space<vmem>>) attributes {dimension_semantics = [#tpu.dimension_semantics<parallel>, #tpu.dimension_semantics<arbitrary>], iteration_bounds = array<i64: 2, 4>, scalar_prefetch = 0 : i64, scratch_operands = 1 : i64, tpu.core_type = #tpu.core_type<tc>, window_params = [{transform_indices = @transform_0, window_bounds = array<i64: 8, 32>}, {pipeline_mode = #tpu.pipeline_mode<synchronous>, transform_indices = @transform_1, window_bounds = array<i64: 32, 32>}, {pipeline_mode = #tpu.pipeline_mode<synchronous>, transform_indices = @transform_2, window_bounds = array<i64: 1, 32>}, {pipeline_mode = #tpu.pipeline_mode<synchronous>, transform_indices = @transform_3, window_bounds = array<i64: 1, 32>}, {pipeline_mode = #tpu.pipeline_mode<synchronous>, transform_indices = @transform_4, window_bounds = array<i64: 1, 32>}, {transform_indices = @transform_5, window_bounds = array<i64: 32, 256>}, {transform_indices = @transform_6, window_bounds = array<i64: 1, 256>}, {transform_indices = @transform_7, window_bounds = array<i64: 8, 256>}]} {
    %c0_i32 = arith.constant 0 : i32
    %0 = arith.cmpi eq, %arg1, %c0_i32 : i32
    %1 = arith.extui %0 : i1 to i32
    %c0_i32_0 = arith.constant 0 : i32
    %2 = arith.cmpi ne, %1, %c0_i32_0 : i32
    scf.if %2 {
      %c0_8 = arith.constant 0 : index
      %c0_9 = arith.constant 0 : index
      %10 = vector.load %arg2[%c0_8, %c0_9] : memref<8x32xf32, #tpu.memory_space<vmem>>, vector<8x32xf32>
      %11 = arith.truncf %10 : vector<8x32xf32> to vector<8x32xbf16>
      %c0_10 = arith.constant 0 : index
      %c0_11 = arith.constant 0 : index
      %12 = vector.load %arg3[%c0_10, %c0_11] : memref<32x32xbf16, #tpu.memory_space<vmem>>, vector<32x32xbf16>
      %cst_12 = arith.constant dense<0.000000e+00> : vector<8x32xf32>
      %13 = tpu.matmul %11, %12, %cst_12 {dimension_numbers = #tpu.dot_dimension_numbers<[1], [0], [0], [1], [0, 0, 1, 1], [], []>} : vector<8x32xbf16>, vector<32x32xbf16>, vector<8x32xf32> -> vector<8x32xf32>
      %c0_13 = arith.constant 0 : index
      %c0_14 = arith.constant 0 : index
      %14 = vector.load %arg4[%c0_13, %c0_14] : memref<1x32xf32, #tpu.memory_space<vmem>>, vector<1x32xf32>
      %15 = vector.broadcast %14 : vector<1x32xf32> to vector<8x32xf32>
      %16 = arith.addf %13, %15 : vector<8x32xf32>
      %cst_15 = arith.constant 5.000000e-01 : f32
      %17 = vector.broadcast %cst_15 : f32 to vector<8x32xf32>
      %18 = arith.mulf %16, %17 : vector<8x32xf32>
      %cst_16 = arith.constant 0.707106769 : f32
      %19 = vector.broadcast %cst_16 : f32 to vector<8x32xf32>
      %20 = arith.mulf %16, %19 : vector<8x32xf32>
      %21 = math.erf %20 : vector<8x32xf32>
      %cst_17 = arith.constant 1.000000e+00 : f32
      %22 = vector.broadcast %cst_17 : f32 to vector<8x32xf32>
      %23 = arith.addf %22, %21 : vector<8x32xf32>
      %24 = arith.mulf %18, %23 : vector<8x32xf32>
      %cst_18 = arith.constant dense<0.000000e+00> : vector<8xf32>
      %25 = vector.multi_reduction <add>, %24, %cst_18 [1] : vector<8x32xf32> to vector<8xf32>
      %26 = vector.shape_cast %25 : vector<8xf32> to vector<8x1xf32>
      %cst_19 = arith.constant 3.200000e+01 : f32
      %27 = vector.broadcast %cst_19 : f32 to vector<8x1xf32>
      %28 = arith.divf %26, %27 : vector<8x1xf32>
      %29 = vector.broadcast %28 : vector<8x1xf32> to vector<8x32xf32>
      %30 = arith.subf %24, %29 : vector<8x32xf32>
      %31 = arith.mulf %30, %30 : vector<8x32xf32>
      %cst_20 = arith.constant dense<0.000000e+00> : vector<8xf32>
      %32 = vector.multi_reduction <add>, %31, %cst_20 [1] : vector<8x32xf32> to vector<8xf32>
      %33 = vector.shape_cast %32 : vector<8xf32> to vector<8x1xf32>
      %cst_21 = arith.constant 3.200000e+01 : f32
      %34 = vector.broadcast %cst_21 : f32 to vector<8x1xf32>
      %35 = arith.divf %33, %34 : vector<8x1xf32>
      %36 = vector.broadcast %28 : vector<8x1xf32> to vector<8x32xf32>
      %37 = arith.subf %24, %36 : vector<8x32xf32>
      %cst_22 = arith.constant 9.99999996E-13 : f32
      %38 = vector.broadcast %cst_22 : f32 to vector<8x1xf32>
      %39 = arith.addf %35, %38 : vector<8x1xf32>
      %40 = math.rsqrt %39 : vector<8x1xf32>
      %41 = vector.broadcast %40 : vector<8x1xf32> to vector<8x32xf32>
      %42 = arith.mulf %37, %41 : vector<8x32xf32>
      %c0_23 = arith.constant 0 : index
      %c0_24 = arith.constant 0 : index
      %43 = vector.load %arg5[%c0_23, %c0_24] : memref<1x32xf32, #tpu.memory_space<vmem>>, vector<1x32xf32>
      %44 = vector.broadcast %43 : vector<1x32xf32> to vector<8x32xf32>
      %45 = arith.mulf %42, %44 : vector<8x32xf32>
      %c0_25 = arith.constant 0 : index
      %c0_26 = arith.constant 0 : index
      %46 = vector.load %arg6[%c0_25, %c0_26] : memref<1x32xf32, #tpu.memory_space<vmem>>, vector<1x32xf32>
      %47 = vector.broadcast %46 : vector<1x32xf32> to vector<8x32xf32>
      %48 = arith.addf %45, %47 : vector<8x32xf32>
      %49 = arith.truncf %48 : vector<8x32xf32> to vector<8x32xbf16>
      %c0_27 = arith.constant 0 : index
      %c0_28 = arith.constant 0 : index
      %50 = vector.load %arg10[%c0_27, %c0_28] : memref<8x32xbf16, #tpu.memory_space<vmem>>, vector<8x32xbf16>
      tpu.vector_store %arg10[%c0_27, %c0_28], %49 {strides = array<i32>} : memref<8x32xbf16, #tpu.memory_space<vmem>>, vector<8x32xbf16>,
    } else {
    }
    %c0 = arith.constant 0 : index
    %c0_1 = arith.constant 0 : index
    %3 = vector.load %arg10[%c0, %c0_1] : memref<8x32xbf16, #tpu.memory_space<vmem>>, vector<8x32xbf16>
    %c0_2 = arith.constant 0 : index
    %c0_3 = arith.constant 0 : index
    %4 = vector.load %arg7[%c0_2, %c0_3] : memref<32x256xbf16, #tpu.memory_space<vmem>>, vector<32x256xbf16>
    %cst = arith.constant dense<0.000000e+00> : vector<8x256xf32>
    %5 = tpu.matmul %3, %4, %cst {dimension_numbers = #tpu.dot_dimension_numbers<[1], [0], [0], [1], [0, 0, 1, 1], [], []>} : vector<8x32xbf16>, vector<32x256xbf16>, vector<8x256xf32> -> vector<8x256xf32>
    %c0_4 = arith.constant 0 : index
    %c0_5 = arith.constant 0 : index
    %6 = vector.load %arg8[%c0_4, %c0_5] : memref<1x256xf32, #tpu.memory_space<vmem>>, vector<1x256xf32>
    %7 = vector.broadcast %6 : vector<1x256xf32> to vector<8x256xf32>
    %8 = arith.addf %5, %7 : vector<8x256xf32>
    %c0_6 = arith.constant 0 : index
    %c0_7 = arith.constant 0 : index
    %9 = vector.load %arg9[%c0_6, %c0_7] : memref<8x256xf32, #tpu.memory_space<vmem>>, vector<8x256xf32>
    tpu.vector_store %arg9[%c0_6, %c0_7], %8 {strides = array<i32>} : memref<8x256xf32, #tpu.memory_space<vmem>>, vector<8x256xf32>,
    return
  }
  func.func @transform_0(%arg0: i32, %arg1: i32) -> (i32, i32) {
    %c0_i32 = arith.constant 0 : i32
    %c0_i32_0 = arith.constant 0 : i32
    return %arg0, %c0_i32 : i32, i32
  }
  func.func @transform_1(%arg0: i32, %arg1: i32) -> (i32, i32) {
    %c0_i32 = arith.constant 0 : i32
    %c0_i32_0 = arith.constant 0 : i32
    %c0_i32_1 = arith.constant 0 : i32
    return %c0_i32, %c0_i32_0 : i32, i32
  }
  func.func @transform_2(%arg0: i32, %arg1: i32) -> (i32, i32) {
    %c0_i32 = arith.constant 0 : i32
    %c0_i32_0 = arith.constant 0 : i32
    %c0_i32_1 = arith.constant 0 : i32
    return %c0_i32, %c0_i32_0 : i32, i32
  }
  func.func @transform_3(%arg0: i32, %arg1: i32) -> (i32, i32) {
    %c0_i32 = arith.constant 0 : i32
    %c0_i32_0 = arith.constant 0 : i32
    %c0_i32_1 = arith.constant 0 : i32
    return %c0_i32, %c0_i32_0 : i32, i32
  }
  func.func @transform_4(%arg0: i32, %arg1: i32) -> (i32, i32) {
    %c0_i32 = arith.constant 0 : i32
    %c0_i32_0 = arith.constant 0 : i32
    %c0_i32_1 = arith.constant 0 : i32
    return %c0_i32, %c0_i32_0 : i32, i32
  }
  func.func @transform_5(%arg0: i32, %arg1: i32) -> (i32, i32) {
    %c0_i32 = arith.constant 0 : i32
    %c0_i32_0 = arith.constant 0 : i32
    return %c0_i32, %arg1 : i32, i32
  }
  func.func @transform_6(%arg0: i32, %arg1: i32) -> (i32, i32) {
    %c0_i32 = arith.constant 0 : i32
    %c0_i32_0 = arith.constant 0 : i32
    return %c0_i32, %arg1 : i32, i32
  }
  func.func @transform_7(%arg0: i32, %arg1: i32) -> (i32, i32) {
    %c0_i32 = arith.constant 0 : i32
    return %arg0, %arg1 : i32, i32
  }
}

</mosaic_0001>

<llo_original>
// kernel: tpu_custom_call.1
$region0: #{tpu_custom_call.1}
  #allocation0 [shape = 'u32[]', space=smem, size = 0x4, offset = 0x4, fixed_abs, tag = 'smem constant byte address 0x4 - core index']
  #allocation1 [shape = 'u32[144,128]{1,0:T(1,128)}', space=vmem, size = 0x12000, scoped, tag = 'internal scratch']
  #allocation2 [shape = 'bf16[8,32]{1,0:T(8,128)(2,1)}', space=vmem, size = 0x800, scoped, tag = 'scratch operand']
  %s0 = inlined_call_operand.hbm [shape: f32[16,32], index: 0, kind: input, shape index: {}]
  %s1 = inlined_call_operand.hbm [shape: bf16[32,32], index: 1, kind: input, shape index: {}]
  %s2 = inlined_call_operand.vmem [shape: f32[1,32], index: 2, kind: input, shape index: {}]
  %s3 = inlined_call_operand.vmem [shape: f32[1,32], index: 3, kind: input, shape index: {}]
  %s4 = inlined_call_operand.vmem [shape: f32[1,32], index: 4, kind: input, shape index: {}]
  %s5 = inlined_call_operand.hbm [shape: bf16[32,1024], index: 5, kind: input, shape index: {}]
  %s6 = inlined_call_operand.vmem [shape: f32[1,1024], index: 6, kind: input, shape index: {}]
  %s7 = inlined_call_operand.hbm [shape: f32[16,1024], index: 7, kind: output, shape index: {}]
  %s8 = sld [smem:[#allocation0]]
  $region77: #{tpu_custom_call.1} parent=0
    _
  %s10 = ssub.s32 1, %s8
  %s11 = scalar_select 0, %s10, %s8
  $region1: #{tpu_custom_call.1} parent=0
    #allocation3 [shape = 'u8[8192]{0}', space=vmem, size = 0x2000, scoped, tag = 'input window, operand 0']
    #allocation4 [shape = 's32[2]{0}', space=sflag, size = 0x8, scoped, tag = 'scoped memory for tpu_custom_call.1']
    #allocation5 [shape = 's32[2]{0}', space=sflag, size = 0x8, scoped, tag = 'scoped memory for tpu_custom_call.1']
    #allocation6 [shape = 'u8[8192]{0}', space=vmem, size = 0x2000, scoped, tag = 'input window, operand 1, single buffered']
    #allocation7 [shape = 's32[1]{0}', space=sflag, size = 0x4, scoped, tag = 'scoped memory for tpu_custom_call.1']
    #allocation8 [shape = 'u8[32768]{0}', space=vmem, size = 0x8000, scoped, tag = 'input window, operand 5']
    #allocation9 [shape = 'u8[16384]{0}', space=vmem, size = 0x4000, scoped, tag = 'output window, operand 0']
    %12 = vsyncpa [#allocation4], 0
    %s13 = scalar_lea.sflag [#allocation4], 1
    %14 = vsyncpa %s13, 0
    %15 = vsyncpa [#allocation7], 0
    %16 = vsyncpa [#allocation5], 0
    %s17 = scalar_lea.sflag [#allocation5], 1
    %18 = vsyncpa %s17, 0
    loop: start=0, step=1, limit=10
    $region2: #{tpu_custom_call.1} parent=1 // loop_pre_header
      _
    $region3: #{tpu_custom_call.1} parent=1 // loop_header
      %s20 = sphi 0, %s24
      %p21 = scmp.ge.s32.totalorder %s20, 10
      %s27 = sphi 0, %s39
      %s28 = sphi 0, %s35
      %s29 = sphi 0, %s27
      %s30 = sphi 0, %s28
      %s31 = sphi 0, %s29
      %s32 = sphi 0, %s30
      %s42 = sphi 0, %s44
      %s45 = sphi 0, %s42
      %s46 = sphi 0, %s45
      %s62 = sphi 0, %s46
      %s66 = sphi 0, %s66
      %s68 = sphi 0, %s66
      %s69 = sphi 0, %s68
      %s83 = sphi 0, %s69
      %s87 = sphi 0, %s87
      %s89 = sphi 0, %s87
      %s90 = sphi 0, %s89
      %s104 = sphi 0, %s90
      %s108 = sphi 0, %s108
      %s110 = sphi 0, %s108
      %s111 = sphi 0, %s110
      %s125 = sphi 0, %s111
      %s129 = sphi 0, %s129
      %s131 = sphi 0, %s129
      %s132 = sphi 0, %s131
      %s146 = sphi 0, %s132
      %s152 = sphi 0, %s154
      %s155 = sphi 0, %s152
      %s156 = sphi 0, %s155
      %s172 = sphi 0, %s156
      %s178 = sphi 0, %s180
      %s181 = sphi 0, %s178
      %s182 = sphi 0, %s181
      %s198 = sphi 0, %s182
      %s206 = sphi 0, %s208
      %s209 = sphi 0, %s206
      %s210 = sphi 0, %s209
      %s226 = sphi 0, %s210
    $region4: #{tpu_custom_call.1} parent=1 // loop_header_branch
      %23 = sbr.rel (%p21) target = $region8
    $region5: #{tpu_custom_call.1} parent=1 // loop_body
      %s25 = ssub.s32 %s20, 1
      %s26 = ssub.s32 %s20, 2
      %s33 = sadd.s32 1, %s28
      %p34 = scmp.ge.s32.totalorder %s33, 4
      %s35 = scalar_select %p34, 0, %s33
      %s36 = sadd.s32 1, %s27
      %s37 = scalar_select %p34, %s36, %s27
      %p38 = scmp.ge.s32.totalorder %s37, 2
      %s39 = scalar_select %p38, 0, %s37
      %s40 = ssub.s32 %s27, %s39
      %p41 = scmp.eq.s32.totalorder %s40, 0
      %s43 = sadd.s32 %s42, 1
      %s44 = scalar_select %p41, %s42, %s43
      %p47 = pneg %p41
      %p48 = scmp.eq.s32.totalorder %s20, 7
      %p49 = por %p47, %p48
      %p50 = scmp.ne.s32.totalorder %s42, %s45
      %p51 = scmp.eq.s32.totalorder %s20, 0
      %p52 = por %p50, %p51
      %p53 = scmp.ne.s32.totalorder %s42, %s45
      %p54 = scmp.eq.s32.totalorder %s25, 7
      %p55 = por %p53, %p54
      %p56 = scmp.ne.s32.totalorder %s45, %s46
      %p57 = scmp.eq.s32.totalorder %s25, 0
      %p58 = por %p56, %p57
      %p59 = scmp.ne.s32.totalorder %s45, %s46
      %p60 = scmp.eq.s32.totalorder %s26, 7
      %p61 = por %p59, %p60
      %p63 = scmp.ne.s32.totalorder %s46, %s62
      %p64 = scmp.eq.s32.totalorder %s26, 0
      %p65 = por %p63, %p64
      %s67 = sadd.s32 %s66, 1
      %p70 = scmp.eq.s32.totalorder %s20, 7
      %p71 = scmp.ne.s32.totalorder %s66, %s68
      %p72 = scmp.eq.s32.totalorder %s20, 0
      %p73 = por %p71, %p72
      %p74 = scmp.ne.s32.totalorder %s66, %s68
      %p75 = scmp.eq.s32.totalorder %s25, 7
      %p76 = por %p74, %p75
      %p77 = scmp.ne.s32.totalorder %s68, %s69
      %p78 = scmp.eq.s32.totalorder %s25, 0
      %p79 = por %p77, %p78
      %p80 = scmp.ne.s32.totalorder %s68, %s69
      %p81 = scmp.eq.s32.totalorder %s26, 7
      %p82 = por %p80, %p81
      %p84 = scmp.ne.s32.totalorder %s69, %s83
      %p85 = scmp.eq.s32.totalorder %s26, 0
      %p86 = por %p84, %p85
      %s88 = sadd.s32 %s87, 1
      %p91 = scmp.eq.s32.totalorder %s20, 7
      %p92 = scmp.ne.s32.totalorder %s87, %s89
      %p93 = scmp.eq.s32.totalorder %s20, 0
      %p94 = por %p92, %p93
      %p95 = scmp.ne.s32.totalorder %s87, %s89
      %p96 = scmp.eq.s32.totalorder %s25, 7
      %p97 = por %p95, %p96
      %p98 = scmp.ne.s32.totalorder %s89, %s90
      %p99 = scmp.eq.s32.totalorder %s25, 0
      %p100 = por %p98, %p99
      %p101 = scmp.ne.s32.totalorder %s89, %s90
      %p102 = scmp.eq.s32.totalorder %s26, 7
      %p103 = por %p101, %p102
      %p105 = scmp.ne.s32.totalorder %s90, %s104
      %p106 = scmp.eq.s32.totalorder %s26, 0
      %p107 = por %p105, %p106
      %s109 = sadd.s32 %s108, 1
      %p112 = scmp.eq.s32.totalorder %s20, 7
      %p113 = scmp.ne.s32.totalorder %s108, %s110
      %p114 = scmp.eq.s32.totalorder %s20, 0
      %p115 = por %p113, %p114
      %p116 = scmp.ne.s32.totalorder %s108, %s110
      %p117 = scmp.eq.s32.totalorder %s25, 7
      %p118 = por %p116, %p117
      %p119 = scmp.ne.s32.totalorder %s110, %s111
      %p120 = scmp.eq.s32.totalorder %s25, 0
      %p121 = por %p119, %p120
      %p122 = scmp.ne.s32.totalorder %s110, %s111
      %p123 = scmp.eq.s32.totalorder %s26, 7
      %p124 = por %p122, %p123
      %p126 = scmp.ne.s32.totalorder %s111, %s125
      %p127 = scmp.eq.s32.totalorder %s26, 0
      %p128 = por %p126, %p127
      %s130 = sadd.s32 %s129, 1
      %p133 = scmp.eq.s32.totalorder %s20, 7
      %p134 = scmp.ne.s32.totalorder %s129, %s131
      %p135 = scmp.eq.s32.totalorder %s20, 0
      %p136 = por %p134, %p135
      %p137 = scmp.ne.s32.totalorder %s129, %s131
      %p138 = scmp.eq.s32.totalorder %s25, 7
      %p139 = por %p137, %p138
      %p140 = scmp.ne.s32.totalorder %s131, %s132
      %p141 = scmp.eq.s32.totalorder %s25, 0
      %p142 = por %p140, %p141
      %p143 = scmp.ne.s32.totalorder %s131, %s132
      %p144 = scmp.eq.s32.totalorder %s26, 7
      %p145 = por %p143, %p144
      %p147 = scmp.ne.s32.totalorder %s132, %s146
      %p148 = scmp.eq.s32.totalorder %s26, 0
      %p149 = por %p147, %p148
      %s150 = ssub.s32 %s28, %s35
      %p151 = scmp.eq.s32.totalorder %s150, 0
      %s153 = sadd.s32 %s152, 1
      %s154 = scalar_select %p151, %s152, %s153
      %p157 = pneg %p151
      %p158 = scmp.eq.s32.totalorder %s20, 7
      %p159 = por %p157, %p158
      %p160 = scmp.ne.s32.totalorder %s152, %s155
      %p161 = scmp.eq.s32.totalorder %s20, 0
      %p162 = por %p160, %p161
      %p163 = scmp.ne.s32.totalorder %s152, %s155
      %p164 = scmp.eq.s32.totalorder %s25, 7
      %p165 = por %p163, %p164
      %p166 = scmp.ne.s32.totalorder %s155, %s156
      %p167 = scmp.eq.s32.totalorder %s25, 0
      %p168 = por %p166, %p167
      %p169 = scmp.ne.s32.totalorder %s155, %s156
      %p170 = scmp.eq.s32.totalorder %s26, 7
      %p171 = por %p169, %p170
      %p173 = scmp.ne.s32.totalorder %s156, %s172
      %p174 = scmp.eq.s32.totalorder %s26, 0
      %p175 = por %p173, %p174
      %s176 = ssub.s32 %s28, %s35
      %p177 = scmp.eq.s32.totalorder %s176, 0
      %s179 = sadd.s32 %s178, 1
      %s180 = scalar_select %p177, %s178, %s179
      %p183 = pneg %p177
      %p184 = scmp.eq.s32.totalorder %s20, 7
      %p185 = por %p183, %p184
      %p186 = scmp.ne.s32.totalorder %s178, %s181
      %p187 = scmp.eq.s32.totalorder %s20, 0
      %p188 = por %p186, %p187
      %p189 = scmp.ne.s32.totalorder %s178, %s181
      %p190 = scmp.eq.s32.totalorder %s25, 7
      %p191 = por %p189, %p190
      %p192 = scmp.ne.s32.totalorder %s181, %s182
      %p193 = scmp.eq.s32.totalorder %s25, 0
      %p194 = por %p192, %p193
      %p195 = scmp.ne.s32.totalorder %s181, %s182
      %p196 = scmp.eq.s32.totalorder %s26, 7
      %p197 = por %p195, %p196
      %p199 = scmp.ne.s32.totalorder %s182, %s198
      %p200 = scmp.eq.s32.totalorder %s26, 0
      %p201 = por %p199, %p200
      %s202 = ssub.s32 %s27, %s39
      %s203 = ssub.s32 %s28, %s35
      %s204 = sor.u32 %s202, %s203
      %p205 = scmp.eq.s32.totalorder %s204, 0
      %s207 = sadd.s32 %s206, 1
      %s208 = scalar_select %p205, %s206, %s207
      %p211 = pneg %p205
      %p212 = scmp.eq.s32.totalorder %s20, 7
      %p213 = por %p211, %p212
      %p214 = scmp.ne.s32.totalorder %s206, %s209
      %p215 = scmp.eq.s32.totalorder %s20, 0
      %p216 = por %p214, %p215
      %p217 = scmp.ne.s32.totalorder %s206, %s209
      %p218 = scmp.eq.s32.totalorder %s25, 7
      %p219 = por %p217, %p218
      %p220 = scmp.ne.s32.totalorder %s209, %s210
      %p221 = scmp.eq.s32.totalorder %s25, 0
      %p222 = por %p220, %p221
      %p223 = scmp.ne.s32.totalorder %s209, %s210
      %p224 = scmp.eq.s32.totalorder %s26, 7
      %p225 = por %p223, %p224
      %p227 = scmp.ne.s32.totalorder %s210, %s226
      %p228 = scmp.eq.s32.totalorder %s26, 0
      %p229 = por %p227, %p228
      %p230 = scmp.le.s32.totalorder 1, %s20
      %p231 = scmp.lt.s32.totalorder %s20, 9
      %p232 = pnand %p230, %p231
      %p233 = pneg %p232
      // Predicated region
      $region9: #{tpu_custom_call.1} parent=5 // pred_check
        _
      $region10: #{tpu_custom_call.1} parent=5 // pred_check_branch
        %235 = sbr.rel (%p232) target = $region12
      $region11: #{tpu_custom_call.1} parent=5 // pred_region
        %s236 = ssub.s32 %s20, 1
        // Predicated region
        $region13: #{tpu_custom_call.1} parent=11 // pred_check
          %p237 = pneg %p79
        $region14: #{tpu_custom_call.1} parent=11 // pred_check_branch
          %239 = sbr.rel (%p237) target = $region16
        $region15: #{tpu_custom_call.1} parent=11 // pred_region
          %s241 = ssub.s32 256, 256
          %242 = vsyncadd [#allocation7], %s241
          %s243 = sshll.u32 [#allocation6], 4
          %s244 = int_to_ptr.vmem [resolvable:$true] %s243
          %249 = dma.hbm_to_vmem [thread:$0]  %s1, 256, %s244, [#allocation7], 64, 64, 4
        $region16: #{tpu_custom_call.1} parent=11 // pred_fallthru
          _
        // Predicated region
        $region17: #{tpu_custom_call.1} parent=11 // pred_check
          %p250 = pneg %p100
        $region18: #{tpu_custom_call.1} parent=11 // pred_check_branch
          %252 = sbr.rel (%p250) target = $region20
        $region19: #{tpu_custom_call.1} parent=11 // pred_region
          _
        $region20: #{tpu_custom_call.1} parent=11 // pred_fallthru
          _
        // Predicated region
        $region21: #{tpu_custom_call.1} parent=11 // pred_check
          %p253 = pneg %p121
        $region22: #{tpu_custom_call.1} parent=11 // pred_check_branch
          %255 = sbr.rel (%p253) target = $region24
        $region23: #{tpu_custom_call.1} parent=11 // pred_region
          _
        $region24: #{tpu_custom_call.1} parent=11 // pred_fallthru
          _
        // Predicated region
        $region25: #{tpu_custom_call.1} parent=11 // pred_check
          %p256 = pneg %p142
        $region26: #{tpu_custom_call.1} parent=11 // pred_check_branch
          %258 = sbr.rel (%p256) target = $region28
        $region27: #{tpu_custom_call.1} parent=11 // pred_region
          _
        $region28: #{tpu_custom_call.1} parent=11 // pred_fallthru
          _
      $region12: #{tpu_custom_call.1} parent=5 // pred_fallthru
        _
      %p259 = scmp.lt.s32.totalorder %s20, 8
      // Predicated region
      $region29: #{tpu_custom_call.1} parent=5 // pred_check
        %p260 = pneg %p259
      $region30: #{tpu_custom_call.1} parent=5 // pred_check_branch
        %262 = sbr.rel (%p260) target = $region32
      $region31: #{tpu_custom_call.1} parent=5 // pred_region
        // Predicated region
        $region33: #{tpu_custom_call.1} parent=31 // pred_check
          %p263 = pneg %p52
        $region34: #{tpu_custom_call.1} parent=31 // pred_check_branch
          %265 = sbr.rel (%p263) target = $region36
        $region35: #{tpu_custom_call.1} parent=31 // pred_region
          %s266 = sand.u32 %s20, 1
          %s267 = scalar_lea.sflag [#allocation4], %s266
          %s268 = sand.u32 %s42, 1
          %s269 = smul.addr %s268, 8
          %s270 = scalar_lea.vmem [#allocation3], %s269
          %s272 = ssub.s32 128, 128
          %273 = vsyncadd %s267, %s272
          %s274 = smul.addr %s27, 128
          %s275 = scalar_lea.hbm %s0, %s274
          %s277 = sshll.u32 %s270, 4
          %s278 = int_to_ptr.vmem [resolvable:$true] %s277
          %280 = dma.hbm_to_vmem [thread:$0]  %s275, 128, %s278, %s267
        $region36: #{tpu_custom_call.1} parent=31 // pred_fallthru
          _
        // Predicated region
        $region37: #{tpu_custom_call.1} parent=31 // pred_check
          %p281 = pneg %p162
        $region38: #{tpu_custom_call.1} parent=31 // pred_check_branch
          %283 = sbr.rel (%p281) target = $region40
        $region39: #{tpu_custom_call.1} parent=31 // pred_region
          %s284 = sand.u32 %s20, 1
          %s285 = scalar_lea.sflag [#allocation4], %s284
          %s286 = sand.u32 %s152, 1
          %s287 = smul.addr %s286, 32
          %s288 = scalar_lea.vmem [#allocation8], %s287
          %s289 = smul.u32 2, %s28
          %s291 = ssub.s32 512, 512
          %292 = vsyncadd %s285, %s291
          %s293 = smul.addr %s289, 64
          %s294 = scalar_lea.hbm %s5, %s293
          %s295 = sshll.u32 %s288, 4
          %s296 = int_to_ptr.vmem [resolvable:$true] %s295
          %301 = dma.hbm_to_vmem [thread:$0]  %s294, 512, %s296, %s285, 512, 128, 8
        $region40: #{tpu_custom_call.1} parent=31 // pred_fallthru
          _
        // Predicated region
        $region41: #{tpu_custom_call.1} parent=31 // pred_check
          %p302 = pneg %p188
        $region42: #{tpu_custom_call.1} parent=31 // pred_check_branch
          %304 = sbr.rel (%p302) target = $region44
        $region43: #{tpu_custom_call.1} parent=31 // pred_region
          %s305 = smul.u32 2, %s28
          %p306 = scmp.lt.s32.totalorder %s305, 7
          %s307 = scalar_select %p306, %s305, 7
          %s308 = scalar_lea.vmem %s6, %s307
          %s309 = smul.u32 2, %s28
        $region44: #{tpu_custom_call.1} parent=31 // pred_fallthru
          _
      $region32: #{tpu_custom_call.1} parent=5 // pred_fallthru
        _
      %p310 = scmp.le.s32.totalorder 1, %s20
      %p311 = scmp.lt.s32.totalorder %s20, 9
      %p312 = pnand %p310, %p311
      %p313 = pneg %p312
      // Predicated region
      $region45: #{tpu_custom_call.1} parent=5 // pred_check
        _
      $region46: #{tpu_custom_call.1} parent=5 // pred_check_branch
        %315 = sbr.rel (%p312) target = $region48
      $region47: #{tpu_custom_call.1} parent=5 // pred_region
        %s316 = ssub.s32 %s20, 1
        %s317 = sand.u32 %s25, 1
        %s318 = scalar_lea.sflag [#allocation4], %s317
        %s319 = sand.u32 %s45, 1
        %s320 = smul.addr %s319, 8
        %s321 = scalar_lea.vmem [#allocation3], %s320
        // Predicated region
        $region49: #{tpu_custom_call.1} parent=47 // pred_check
          %p322 = pneg %p58
        $region50: #{tpu_custom_call.1} parent=47 // pred_check_branch
          %324 = sbr.rel (%p322) target = $region52
        $region51: #{tpu_custom_call.1} parent=47 // pred_region
          %325 = dma.done %s318, 128
        $region52: #{tpu_custom_call.1} parent=47 // pred_fallthru
          _
        // Predicated region
        $region53: #{tpu_custom_call.1} parent=47 // pred_check
          %p326 = pneg %p79
        $region54: #{tpu_custom_call.1} parent=47 // pred_check_branch
          %328 = sbr.rel (%p326) target = $region56
        $region55: #{tpu_custom_call.1} parent=47 // pred_region
          %329 = dma.done [#allocation7], 256
        $region56: #{tpu_custom_call.1} parent=47 // pred_fallthru
          _
        %s330 = sand.u32 %s25, 1
        %s331 = scalar_lea.sflag [#allocation4], %s330
        %s332 = sand.u32 %s155, 1
        %s333 = smul.addr %s332, 32
        %s334 = scalar_lea.vmem [#allocation8], %s333
        // Predicated region
        $region57: #{tpu_custom_call.1} parent=47 // pred_check
          %p335 = pneg %p168
        $region58: #{tpu_custom_call.1} parent=47 // pred_check_branch
          %337 = sbr.rel (%p335) target = $region60
        $region59: #{tpu_custom_call.1} parent=47 // pred_region
          %338 = dma.done %s331, 512
        $region60: #{tpu_custom_call.1} parent=47 // pred_fallthru
          _
        %s339 = sand.u32 %s25, 1
        %s340 = scalar_lea.sflag [#allocation4], %s339
        %s341 = sand.u32 %s45, 1
        %s342 = smul.addr %s341, 8
        %s343 = scalar_lea.vmem [#allocation3], %s342
        %p344 = pneg %p58
        %p345 = pneg %p55
        %p346 = pneg %p79
        %p347 = pneg %p76
        %p348 = pneg %p100
        %p349 = pneg %p97
        %p350 = pneg %p121
        %p351 = pneg %p118
        %p352 = pneg %p142
        %p353 = pneg %p139
        %s354 = sand.u32 %s25, 1
        %s355 = scalar_lea.sflag [#allocation4], %s354
        %s356 = sand.u32 %s155, 1
        %s357 = smul.addr %s356, 32
        %s358 = scalar_lea.vmem [#allocation8], %s357
        %p359 = pneg %p168
        %p360 = pneg %p165
        %s361 = smul.u32 2, %s30
        %p362 = scmp.lt.s32.totalorder %s361, 7
        %s363 = scalar_select %p362, %s361, 7
        %s364 = scalar_lea.vmem %s6, %s363
        %p365 = pneg %p194
        %p366 = pneg %p191
        %p367 = pneg %p222
        %p368 = pneg %p219
        %s369 = sand.u32 %s209, 1
        %s370 = scalar_lea.sflag [#allocation5], %s369
        %s371 = sand.u32 %s209, 1
        %s372 = smul.addr %s371, 16
        %s373 = scalar_lea.vmem [#allocation9], %s372
        %s374 = smul.u32 2, %s30
        %s375 = smul.u32 2, %s30
        %p376 = scmp.lt.s32.totalorder %s375, 7
        %s377 = scalar_select %p376, %s375, 7
        %s378 = scalar_lea.vmem %s6, %s377
        %s379 = smul.u32 2, %s30
        %s380 = smul.u32 2, %s30
        %p382 = scmp.eq.s32.totalorder %s30, 0
        // Predicated region
        $region61: #{tpu_custom_call.1} parent=47 // pred_check
          %p383 = pneg %p382
        $region62: #{tpu_custom_call.1} parent=47 // pred_check_branch
          %385 = sbr.rel (%p383) target = $region64
        $region63: #{tpu_custom_call.1} parent=47 // pred_region
          %v386 = vld [vmem:[%s321] sm:$0xff]
          %v387 = vpack.c.bf16 %v386, %v386
          %v388 = vld [vmem:[#allocation6] sm:$0xf]
          %v389 = vld [vmem:[#allocation6 + $0x4] sm:$0xf]
          %v390 = vld [vmem:[#allocation6 + $0x8] sm:$0xf]
          %v391 = vld [vmem:[#allocation6 + $0xc] sm:$0xf]
          %v392 = vld [vmem:[%s2] sm:$0x1]
          %v394 = vlaneseq
          %v395 = vshrl.u32 %v394, 7
          %v396 = vsub.s32 0, %v395
          %v397 = vrot.slane %v392, %v396
          %v403 = vunpack.c.l.b16 %v388
          %v404 = vunpack.c.l.b16 %v389
          %v405 = vunpack.c.l.b16 %v390
          %v406 = vunpack.c.l.b16 %v391
          %v407 = vpack.c.b16 %v404, %v403
          %v408 = vpack.c.b16 %v406, %v405
          %vm411 = vcmask 261120
          %v413 = vsel %vm411, %v387, 0
          %415 = vmatprep.subr.bf16.mxu0 0
          %416 = vmatpush1.bf16.msra.mxu0 %v407
          %417 = vmatprep.subr.bf16.mxu0 0
          %418 = vmatpush1.bf16.msra.mxu0 %v408
          %419 = vmatprep.subr.bf16.mxu0 0
          %420 = vmatpush1.bf16.msra.mxu0 0
          %421 = vmatprep.subr.bf16.mxu0 0
          %422 = vmatpush1.bf16.msra.mxu0 0
          %423 = vmatprep.subr.bf16.mxu0 0
          %424 = vmatpush1.bf16.msra.mxu0 0
          %425 = vmatprep.subr.bf16.mxu0 0
          %426 = vmatpush1.bf16.msra.mxu0 0
          %427 = vmatprep.subr.bf16.mxu0 0
          %428 = vmatpush1.bf16.msra.mxu0 0
          %429 = vmatprep.subr.bf16.mxu0 0
          %430 = vmatpush1.bf16.msra.mxu0 0
          %431 = vmatprep.subr.bf16.mxu0 0
          %432 = vmatpush1.bf16.msra.mxu0 0
          %433 = vmatprep.subr.bf16.mxu0 0
          %434 = vmatpush1.bf16.msra.mxu0 0
          %435 = vmatprep.subr.bf16.mxu0 0
          %436 = vmatpush1.bf16.msra.mxu0 0
          %437 = vmatprep.subr.bf16.mxu0 0
          %438 = vmatpush1.bf16.msra.mxu0 0
          %439 = vmatprep.subr.bf16.mxu0 0
          %440 = vmatpush1.bf16.msra.mxu0 0
          %441 = vmatprep.subr.bf16.mxu0 0
          %442 = vmatpush1.bf16.msra.mxu0 0
          %443 = vmatprep.subr.bf16.mxu0 0
          %444 = vmatpush1.bf16.msra.mxu0 0
          %445 = vmatprep.subr.bf16.mxu0 0
          %446 = vmatpush1.bf16.msra.mxu0 0
          %447 = vmatprep.mubr.bf16.mxu0 0
          %448 = vmatmul.mubr.bf16.gmra.mrb[0].mxu0 %v413
          %v449 = vpop.f32.mrb[0].mxu0
          %v450 = vadd.f32 %v397, %v449
          %v451 = vpop.f32.mrb[0].mxu0
          %v452 = vpop.f32.mrb[0].mxu0
          %v453 = vpop.f32.mrb[0].mxu0
          %454 = vdwg.mxu0
          %v455 = vmul.f32 %v450, 0.5
          %v456 = vmul.f32 %v450, 0.70710677
          %v457 = verf.f32.pop %v456
          %v458 = vadd.f32 %v457, 1.0
          %v459 = vmul.f32 %v455, %v458
          %v460 = vsel %vm411, %v459, 0.0
          %461 = vadd.xlane.f32.xlu0 %v460
          %v462 = vpop.xlane.xlu0 %461
          %v463 = vrcp.pop 32.0
          %v464 = vmul.f32 %v462, %v463
          %v465 = vsub.f32 %v459, %v464
          %v466 = vmul.f32 %v465, %v465
          %v467 = vsel %vm411, %v466, 0.0
          %468 = vadd.xlane.f32.xlu0 %v467
          %v469 = vpop.xlane.xlu0 %468
          %v470 = vmul.f32 %v469, %v463
          %v471 = vadd.f32 %v470, 1e-12
          %v472 = vrsqrt.pop %v471
          %v473 = vmul.f32 %v465, %v472
          %v474 = vld [vmem:[%s3] sm:$0x1]
          %v476 = vlaneseq
          %v477 = vshrl.u32 %v476, 7
          %v478 = vsub.s32 0, %v477
          %v479 = vrot.slane %v474, %v478
          %v481 = vmul.f32 %v473, %v479
          %v482 = vld [vmem:[%s4] sm:$0x1]
          %v484 = vlaneseq
          %v485 = vshrl.u32 %v484, 7
          %v486 = vsub.s32 0, %v485
          %v487 = vrot.slane %v482, %v486
          %v489 = vadd.f32 %v481, %v487
          %v490 = vpack.c.bf16 %v489, %v489
          %vm491 = vcmask 257024
          %492 = vst.msk [vmem:[#allocation2] sm:$0xf] %vm491, %v490
        $region64: #{tpu_custom_call.1} parent=47 // pred_fallthru
          _
        %v493 = vld [vmem:[#allocation2] sm:$0xf]
        %v494 = vld [vmem:[%s334] sm:$0xff]
        %v495 = vld [vmem:[%s334 + $0x8] sm:$0xff]
        %v496 = vld [vmem:[%s334 + $0x10] sm:$0xff]
        %v497 = vld [vmem:[%s334 + $0x18] sm:$0xff]
        %v498 = vld [vmem:[%s378] sm:$0x3]
        %v500 = vlaneseq
        %v501 = vshrl.u32 %v500, 7
        %v502 = vsub.s32 0, %v501
        %v503 = vrot.slane %v498, %v502
        %v504 = vlaneseq
        %v505 = vshrl.u32 %v504, 7
        %v506 = vsub.s32 1, %v505
        %v507 = vrot.slane %v498, %v506
        %v514 = vunpack.c.l.b16 %v494
        %v515 = vunpack.c.h.b16 %v494
        %v516 = vunpack.c.l.b16 %v495
        %v517 = vunpack.c.h.b16 %v495
        %v518 = vunpack.c.l.b16 %v496
        %v519 = vunpack.c.h.b16 %v496
        %v520 = vunpack.c.l.b16 %v497
        %v521 = vunpack.c.h.b16 %v497
        %v522 = vpack.c.b16 %v516, %v514
        %v523 = vpack.c.b16 %v517, %v515
        %v524 = vpack.c.b16 %v520, %v518
        %v525 = vpack.c.b16 %v521, %v519
        %vm530 = vcmask 261120
        %v532 = vsel %vm530, %v493, 0
        %534 = vmatprep.subr.bf16.mxu0 %v523
        %535 = vmatpush1.bf16.msra.mxu0 %v522
        %536 = vmatprep.subr.bf16.mxu0 %v525
        %537 = vmatpush1.bf16.msra.mxu0 %v524
        %538 = vmatprep.subr.bf16.mxu0 0
        %539 = vmatpush1.bf16.msra.mxu0 0
        %540 = vmatprep.subr.bf16.mxu0 0
        %541 = vmatpush1.bf16.msra.mxu0 0
        %542 = vmatprep.subr.bf16.mxu0 0
        %543 = vmatpush1.bf16.msra.mxu0 0
        %544 = vmatprep.subr.bf16.mxu0 0
        %545 = vmatpush1.bf16.msra.mxu0 0
        %546 = vmatprep.subr.bf16.mxu0 0
        %547 = vmatpush1.bf16.msra.mxu0 0
        %548 = vmatprep.subr.bf16.mxu0 0
        %549 = vmatpush1.bf16.msra.mxu0 0
        %550 = vmatprep.subr.bf16.mxu0 0
        %551 = vmatpush1.bf16.msra.mxu0 0
        %552 = vmatprep.subr.bf16.mxu0 0
        %553 = vmatpush1.bf16.msra.mxu0 0
        %554 = vmatprep.subr.bf16.mxu0 0
        %555 = vmatpush1.bf16.msra.mxu0 0
        %556 = vmatprep.subr.bf16.mxu0 0
        %557 = vmatpush1.bf16.msra.mxu0 0
        %558 = vmatprep.subr.bf16.mxu0 0
        %559 = vmatpush1.bf16.msra.mxu0 0
        %560 = vmatprep.subr.bf16.mxu0 0
        %561 = vmatpush1.bf16.msra.mxu0 0
        %562 = vmatprep.subr.bf16.mxu0 0
        %563 = vmatpush1.bf16.msra.mxu0 0
        %564 = vmatprep.subr.bf16.mxu0 0
        %565 = vmatpush1.bf16.msra.mxu0 0
        %566 = vmatprep.mubr.bf16.mxu0 0
        %567 = vmatmul.mubr.bf16.gmra.mrb[0].mxu0 %v532
        %v568 = vpop.f32.mrb[0].mxu0
        %v569 = vadd.f32 %v503, %v568
        %v570 = vpop.f32.mrb[0].mxu0
        %v571 = vadd.f32 %v507, %v570
        %v572 = vpop.f32.mrb[0].mxu0
        %v573 = vpop.f32.mrb[0].mxu0
        %574 = vdwg.mxu0
        %575 = vst [vmem:[%s373] sm:$0xff] %v569
        %576 = vst [vmem:[%s373 + $0x8] sm:$0xff] %v571
        %s577 = sand.u32 %s209, 1
        %s578 = scalar_lea.sflag [#allocation5], %s577
        %s579 = sand.u32 %s209, 1
        %s580 = smul.addr %s579, 16
        %s581 = scalar_lea.vmem [#allocation9], %s580
        // Predicated region
        $region65: #{tpu_custom_call.1} parent=47 // pred_check
          %p582 = pneg %p219
        $region66: #{tpu_custom_call.1} parent=47 // pred_check_branch
          %584 = sbr.rel (%p582) target = $region68
        $region67: #{tpu_custom_call.1} parent=47 // pred_region
          %s585 = smul.u32 2, %s30
          %s587 = ssub.s32 256, 256
          %588 = vsyncadd %s578, %s587
          %s589 = smul.addr %s29, 8
          %s590 = sadd.s32 %s585, %s589
          %s591 = smul.addr %s590, 128
          %s592 = scalar_lea.hbm %s7, %s591
          %s594 = sshll.u32 %s581, 4
          %s595 = int_to_ptr.vmem [resolvable:$true] %s594
          %597 = dma.vmem_to_hbm [thread:$0]  %s595, 256, %s592, %s578
        $region68: #{tpu_custom_call.1} parent=47 // pred_fallthru
          _
      $region48: #{tpu_custom_call.1} parent=5 // pred_fallthru
        _
      %p598 = scmp.le.s32.totalorder 2, %s20
      // Predicated region
      $region69: #{tpu_custom_call.1} parent=5 // pred_check
        %p599 = pneg %p598
      $region70: #{tpu_custom_call.1} parent=5 // pred_check_branch
        %601 = sbr.rel (%p599) target = $region72
      $region71: #{tpu_custom_call.1} parent=5 // pred_region
        %s602 = ssub.s32 %s20, 2
        // Predicated region
        $region73: #{tpu_custom_call.1} parent=71 // pred_check
          %p603 = pneg %p225
        $region74: #{tpu_custom_call.1} parent=71 // pred_check_branch
          %605 = sbr.rel (%p603) target = $region76
        $region75: #{tpu_custom_call.1} parent=71 // pred_region
          %s606 = sand.u32 %s210, 1
          %s607 = scalar_lea.sflag [#allocation5], %s606
          %s608 = sand.u32 %s210, 1
          %s609 = smul.addr %s608, 16
          %s610 = scalar_lea.vmem [#allocation9], %s609
          %611 = dma.done %s607, 256
        $region76: #{tpu_custom_call.1} parent=71 // pred_fallthru
          _
      $region72: #{tpu_custom_call.1} parent=5 // pred_fallthru
        _
    $region6: #{tpu_custom_call.1} parent=1 // loop_footer
      %s24 = sadd.s32 1, %s20
    $region7: #{tpu_custom_call.1} parent=1 // loop_footer_branch
      %19 = sbr.rel target = $region3
    $region8: #{tpu_custom_call.1} parent=1 // loop_exit
      _
    %612 = vsyncpa [#allocation4], 1
    %s613 = scalar_lea.sflag [#allocation4], 1
    %614 = vsyncpa %s613, 1
    %615 = vsyncpa [#allocation7], 1
    %616 = vsyncpa [#allocation5], 1
    %s617 = scalar_lea.sflag [#allocation5], 1
    %618 = vsyncpa %s617, 1

</llo_original>
